<compile_context>
chip_gen: v6e
topology: v6e:2x2x1
jax: 0.10.0
libtpu: 0.0.40
codegen_flags: <defaults>
</compile_context>

<pallas_src>
import math

import jax
import jax.numpy as jnp
from jax.experimental import pallas as pl
from jax.experimental.pallas import tpu as pltpu


def _myrnn2_seq_kernel(x_ref, h0_ref, w_ref, b_ref, y_ref, h_out_ref, h_scratch):
    """One timestep of the fused RNN cell; grid axis 0 iterates time."""
    t = pl.program_id(0)
    d = h0_ref.shape[1]

    # Initialize the carried hidden state from h0 on the first step only.
    @pl.when(t == 0)
    def _():
        h_scratch[...] = h0_ref[...].astype(jnp.float32)

    # gate_input = x_t * h_{t-1}   (elementwise, VPU)
    gate = x_ref[0] * h_scratch[...]                      # (B, D) f32

    # Single fused matmul on the MXU: (B, D) @ (D, 2D) -> (B, 2D).
    # Weight is already in canonical (K, N) layout (transposed once at load
    # time) and typically bf16; accumulate in f32.
    z = jnp.dot(gate.astype(w_ref.dtype), w_ref[...],
                preferred_element_type=jnp.float32) + b_ref[...]   # (B, 2D) f32

    # Split the fused output: first D lanes -> out_gate, last D -> hidden_gate.
    # (Free view when D % 128 == 0; a single cheap lane shift otherwise.)
    z_y = z[:, :d]
    z_h = z[:, d:]

    y = jnp.maximum(z_y, 0.01 * z_y)          # LeakyReLU(0.01): vmul + vmax (VPU)
    h_new = jax.nn.sigmoid(z_h)               # EUP slot

    y_ref[0] = y.astype(y_ref.dtype)          # stream y_t out
    h_scratch[...] = h_new                    # carry h in VMEM across steps

    # Final hidden state is written back to HBM once, at the last step.
    @pl.when(t == pl.num_programs(0) - 1)
    def _():
        h_out_ref[...] = h_new.astype(h_out_ref.dtype)


def prepare_params(w_out, b_out, w_hid, b_hid, param_dtype=jnp.bfloat16):
    """One-time (model-load-time) parameter fusion.

    w_out, w_hid : (D, D) float32, PyTorch nn.Linear (out, in) layout
    b_out, b_hid : (D,)   float32
    Returns w_cat (D, 2D) in canonical (K, N) layout (cast to param_dtype,
    default bf16) and b_cat (1, 2D) kept in f32 (added post-accumulation).
    """
    d = w_out.shape[0]
    w_cat = jnp.concatenate([w_out.T, w_hid.T], axis=1).astype(param_dtype)   # (D, 2D)
    b_cat = jnp.concatenate([b_out, b_hid]).reshape(1, 2 * d).astype(jnp.float32)
    return w_cat, b_cat


@jax.jit
def myrnn2_sequence(xs, h0, w_cat, b_cat):
    """Apply the MyRNN2 cell over a sequence, fully fused in one pallas_call.

    xs    : (T, B, D) float32
    h0    : (B, D)    float32
    w_cat : (D, 2D)   bf16/f32 (pre-fused, pre-transposed)
    b_cat : (1, 2D)   float32
    Returns ys (T, B, D) float32 and h_T (B, D) float32.
    """
    T, B, D = xs.shape

    cost = pl.CostEstimate(
        flops=2 * T * B * (2 * D) * D + 8 * T * B * D,
        transcendentals=T * B * D,                       # sigmoid
        bytes_accessed=(xs.size * xs.dtype.itemsize      # x stream in
                        + T * B * D * 4                  # y stream out
                        + w_cat.size * w_cat.dtype.itemsize   # weights, once
                        + b_cat.size * 4
                        + 2 * B * D * 4),                # h0 in, h_T out
    )

    ys, h_final = pl.pallas_call(
        _myrnn2_seq_kernel,
        out_shape=(
            jax.ShapeDtypeStruct((T, B, D), xs.dtype),
            jax.ShapeDtypeStruct((B, D), xs.dtype),
        ),
        grid_spec=pltpu.PrefetchScalarGridSpec(
            num_scalar_prefetch=0,
            grid=(T,),
            in_specs=[
                pl.BlockSpec((1, B, D), lambda t: (t, 0, 0)),   # x_t  (streamed)
                pl.BlockSpec((B, D), lambda t: (0, 0)),          # h0   (resident)
                pl.BlockSpec((D, 2 * D), lambda t: (0, 0)),      # w_cat (resident)
                pl.BlockSpec((1, 2 * D), lambda t: (0, 0)),      # b_cat (resident)
            ],
            out_specs=(
                pl.BlockSpec((1, B, D), lambda t: (t, 0, 0)),    # y_t  (streamed)
                pl.BlockSpec((B, D), lambda t: (0, 0)),          # h_T  (written once)
            ),
            scratch_shapes=[pltpu.VMEM((B, D), jnp.float32)],    # carried hidden state
        ),
        compiler_params=pltpu.CompilerParams(
            dimension_semantics=("arbitrary",),                  # recurrence: serial
        ),
        cost_estimate=cost,
    )(xs, h0, w_cat, b_cat)
    return ys, h_final


def myrnn2_forward(x, w_cat, b_cat, h=None):
    """Single-step forward matching MyRNN2.forward (h defaults to ones)."""
    if h is None:
        h = jnp.ones_like(x)
    ys, h_new = myrnn2_sequence(x[None], h, w_cat, b_cat)
    return ys[0], h_new


# ----------------------------- pure-JAX reference -----------------------------
def reference_step(x, h, w_out, b_out, w_hid, b_hid):
    gate = x * h
    z_out = gate @ w_out.T + b_out
    y = jnp.where(z_out > 0, z_out, 0.01 * z_out)      # LeakyReLU(0.01)
    h_new = jax.nn.sigmoid(gate @ w_hid.T + b_hid)
    return y, h_new


def reference_sequence(xs, h0, w_out, b_out, w_hid, b_hid):
    h = h0
    ys = []
    for t in range(xs.shape[0]):
        y, h = reference_step(xs[t], h, w_out, b_out, w_hid, b_hid)
        ys.append(y)
    return jnp.stack(ys), h


if __name__ == "__main__":
    B, D, T = 2, 32, 8

    key = jax.random.PRNGKey(0)
    kx, kxs, kwo, kbo, kwh, kbh = jax.random.split(key, 6)

    # Deterministic parameter init (Kaiming-uniform-ish scale like nn.Linear).
    bound = 1.0 / math.sqrt(D)
    w_out = jax.random.uniform(kwo, (D, D), jnp.float32, -bound, bound)
    b_out = jax.random.uniform(kbo, (D,), jnp.float32, -bound, bound)
    w_hid = jax.random.uniform(kwh, (D, D), jnp.float32, -bound, bound)
    b_hid = jax.random.uniform(kbh, (D,), jnp.float32, -bound, bound)

    x = jax.random.normal(kx, (B, D), dtype=jnp.float32)
    h0 = jnp.ones((B, D), dtype=jnp.float32)        # module default h=None -> ones

    # ---- 1) single-step forward, f32 params: exact-semantics check ----------
    w_cat32, b_cat = prepare_params(w_out, b_out, w_hid, b_hid, jnp.float32)
    y, h1 = myrnn2_forward(x, w_cat32, b_cat, h0)
    jax.block_until_ready((y, h1))
    y_ref, h1_ref = reference_step(x, h0, w_out, b_out, w_hid, b_hid)
    assert jnp.allclose(y, y_ref, atol=1e-5, rtol=1e-5)
    assert jnp.allclose(h1, h1_ref, atol=1e-5, rtol=1e-5)

    # ---- 2) fused T-step recurrence, bf16 weights (recommended config) ------
    xs = jax.random.normal(kxs, (T, B, D), dtype=jnp.float32)
    w_cat16, b_cat16 = prepare_params(w_out, b_out, w_hid, b_hid, jnp.bfloat16)
    ys, hT = myrnn2_sequence(xs, h0, w_cat16, b_cat16)
    jax.block_until_ready((ys, hT))
    ys_ref, hT_ref = reference_sequence(xs, h0, w_out, b_out, w_hid, b_hid)
    # bf16 weight storage -> compare against the exact f32 reference with a
    # bf16-appropriate tolerance (accumulation stays f32 on the MXU).
    assert jnp.allclose(ys, ys_ref, atol=5e-2, rtol=5e-2)
    assert jnp.allclose(hT, hT_ref, atol=5e-2, rtol=5e-2)

    print("KERNEL_OK")
</pallas_src>

<mosaic_0001>
module attributes {stable_mosaic.version = 11 : i64} {
  func.func @_myrnn2_seq_kernel(%arg0: i32, %arg1: memref<1x2x32xf32, #tpu.memory_space<vmem>>, %arg2: memref<2x32xf32, #tpu.memory_space<vmem>>, %arg3: memref<32x64xf32, #tpu.memory_space<vmem>>, %arg4: memref<1x64xf32, #tpu.memory_space<vmem>>, %arg5: memref<1x2x32xf32, #tpu.memory_space<vmem>>, %arg6: memref<2x32xf32, #tpu.memory_space<vmem>>, %arg7: memref<2x32xf32, #tpu.memory_space<vmem>>) attributes {dimension_semantics = [#tpu.dimension_semantics<arbitrary>], iteration_bounds = array<i64: 1>, scalar_prefetch = 0 : i64, scratch_operands = 1 : i64, tpu.core_type = #tpu.core_type<tc>, window_params = [{transform_indices = @transform_0, window_bounds = array<i64: 1, 2, 32>}, {pipeline_mode = #tpu.pipeline_mode<synchronous>, transform_indices = @transform_1, window_bounds = array<i64: 2, 32>}, {pipeline_mode = #tpu.pipeline_mode<synchronous>, transform_indices = @transform_2, window_bounds = array<i64: 32, 64>}, {pipeline_mode = #tpu.pipeline_mode<synchronous>, transform_indices = @transform_3, window_bounds = array<i64: 1, 64>}, {transform_indices = @transform_4, window_bounds = array<i64: 1, 2, 32>}, {pipeline_mode = #tpu.pipeline_mode<synchronous>, transform_indices = @transform_5, window_bounds = array<i64: 2, 32>}]} {
    %c0_i32 = arith.constant 0 : i32
    %0 = arith.cmpi eq, %arg0, %c0_i32 : i32
    %1 = arith.extui %0 : i1 to i32
    %c0_i32_0 = arith.constant 0 : i32
    %2 = arith.cmpi ne, %1, %c0_i32_0 : i32
    scf.if %2 {
      %c0_18 = arith.constant 0 : index
      %c0_19 = arith.constant 0 : index
      %29 = vector.load %arg2[%c0_18, %c0_19] : memref<2x32xf32, #tpu.memory_space<vmem>>, vector<2x32xf32>
      %c0_20 = arith.constant 0 : index
      %c0_21 = arith.constant 0 : index
      %30 = vector.load %arg7[%c0_20, %c0_21] : memref<2x32xf32, #tpu.memory_space<vmem>>, vector<2x32xf32>
      tpu.vector_store %arg7[%c0_20, %c0_21], %29 {strides = array<i32>} : memref<2x32xf32, #tpu.memory_space<vmem>>, vector<2x32xf32>,
    } else {
    }
    %c0 = arith.constant 0 : index
    %c0_1 = arith.constant 0 : index
    %c0_2 = arith.constant 0 : index
    %3 = vector.load %arg1[%c0, %c0_1, %c0_2] : memref<1x2x32xf32, #tpu.memory_space<vmem>>, vector<1x2x32xf32>
    %4 = vector.shape_cast %3 : vector<1x2x32xf32> to vector<2x32xf32>
    %c0_3 = arith.constant 0 : index
    %c0_4 = arith.constant 0 : index
    %5 = vector.load %arg7[%c0_3, %c0_4] : memref<2x32xf32, #tpu.memory_space<vmem>>, vector<2x32xf32>
    %6 = arith.mulf %4, %5 : vector<2x32xf32>
    %c0_5 = arith.constant 0 : index
    %c0_6 = arith.constant 0 : index
    %7 = vector.load %arg3[%c0_5, %c0_6] : memref<32x64xf32, #tpu.memory_space<vmem>>, vector<32x64xf32>
    %cst = arith.constant dense<0.000000e+00> : vector<2x64xf32>
    %8 = tpu.matmul %6, %7, %cst {dimension_numbers = #tpu.dot_dimension_numbers<[1], [0], [0], [1], [0, 0, 1, 1], [], []>} : vector<2x32xf32>, vector<32x64xf32>, vector<2x64xf32> -> vector<2x64xf32>
    %c0_7 = arith.constant 0 : index
    %c0_8 = arith.constant 0 : index
    %9 = vector.load %arg4[%c0_7, %c0_8] : memref<1x64xf32, #tpu.memory_space<vmem>>, vector<1x64xf32>
    %10 = vector.broadcast %9 : vector<1x64xf32> to vector<2x64xf32>
    %11 = arith.addf %8, %10 : vector<2x64xf32>
    %12 = vector.extract_strided_slice %11 {offsets = [0, 0], sizes = [2, 32], strides = [1, 1]} : vector<2x64xf32> to vector<2x32xf32>
    %13 = vector.extract_strided_slice %11 {offsets = [0, 32], sizes = [2, 32], strides = [1, 1]} : vector<2x64xf32> to vector<2x32xf32>
    %cst_9 = arith.constant 0.00999999977 : f32
    %14 = vector.broadcast %cst_9 : f32 to vector<2x32xf32>
    %15 = arith.mulf %14, %12 : vector<2x32xf32>
    %16 = arith.maximumf %12, %15 : vector<2x32xf32>
    %17 = arith.negf %13 : vector<2x32xf32>
    %18 = math.exp %17 : vector<2x32xf32>
    %cst_10 = arith.constant 1.000000e+00 : f32
    %19 = vector.broadcast %cst_10 : f32 to vector<2x32xf32>
    %20 = arith.addf %19, %18 : vector<2x32xf32>
    %21 = arith.divf %19, %20 : vector<2x32xf32>
    %c0_11 = arith.constant 0 : index
    %c0_12 = arith.constant 0 : index
    %c0_13 = arith.constant 0 : index
    %22 = vector.load %arg5[%c0_11, %c0_12, %c0_13] : memref<1x2x32xf32, #tpu.memory_space<vmem>>, vector<1x2x32xf32>
    %23 = vector.shape_cast %22 : vector<1x2x32xf32> to vector<2x32xf32>
    %24 = vector.shape_cast %16 : vector<2x32xf32> to vector<1x2x32xf32>
    tpu.vector_store %arg5[%c0_11, %c0_12, %c0_13], %24 {strides = array<i32>} : memref<1x2x32xf32, #tpu.memory_space<vmem>>, vector<1x2x32xf32>,
    %c0_14 = arith.constant 0 : index
    %c0_15 = arith.constant 0 : index
    %25 = vector.load %arg7[%c0_14, %c0_15] : memref<2x32xf32, #tpu.memory_space<vmem>>, vector<2x32xf32>
    tpu.vector_store %arg7[%c0_14, %c0_15], %21 {strides = array<i32>} : memref<2x32xf32, #tpu.memory_space<vmem>>, vector<2x32xf32>,
    %c0_i32_16 = arith.constant 0 : i32
    %26 = arith.cmpi eq, %arg0, %c0_i32_16 : i32
    %27 = arith.extui %26 : i1 to i32
    %c0_i32_17 = arith.constant 0 : i32
    %28 = arith.cmpi ne, %27, %c0_i32_17 : i32
    scf.if %28 {
      %c0_18 = arith.constant 0 : index
      %c0_19 = arith.constant 0 : index
      %29 = vector.load %arg6[%c0_18, %c0_19] : memref<2x32xf32, #tpu.memory_space<vmem>>, vector<2x32xf32>
      tpu.vector_store %arg6[%c0_18, %c0_19], %21 {strides = array<i32>} : memref<2x32xf32, #tpu.memory_space<vmem>>, vector<2x32xf32>,
    } else {
    }
    return
  }
  func.func @transform_0(%arg0: i32) -> (i32, i32, i32) {
    %c0_i32 = arith.constant 0 : i32
    %c0_i32_0 = arith.constant 0 : i32
    %c0_i32_1 = arith.constant 0 : i32
    return %arg0, %c0_i32, %c0_i32_0 : i32, i32, i32
  }
  func.func @transform_1(%arg0: i32) -> (i32, i32) {
    %c0_i32 = arith.constant 0 : i32
    %c0_i32_0 = arith.constant 0 : i32
    %c0_i32_1 = arith.constant 0 : i32
    return %c0_i32, %c0_i32_0 : i32, i32
  }
  func.func @transform_2(%arg0: i32) -> (i32, i32) {
    %c0_i32 = arith.constant 0 : i32
    %c0_i32_0 = arith.constant 0 : i32
    %c0_i32_1 = arith.constant 0 : i32
    return %c0_i32, %c0_i32_0 : i32, i32
  }
  func.func @transform_3(%arg0: i32) -> (i32, i32) {
    %c0_i32 = arith.constant 0 : i32
    %c0_i32_0 = arith.constant 0 : i32
    %c0_i32_1 = arith.constant 0 : i32
    return %c0_i32, %c0_i32_0 : i32, i32
  }
  func.func @transform_4(%arg0: i32) -> (i32, i32, i32) {
    %c0_i32 = arith.constant 0 : i32
    %c0_i32_0 = arith.constant 0 : i32
    %c0_i32_1 = arith.constant 0 : i32
    return %arg0, %c0_i32, %c0_i32_0 : i32, i32, i32
  }
  func.func @transform_5(%arg0: i32) -> (i32, i32) {
    %c0_i32 = arith.constant 0 : i32
    %c0_i32_0 = arith.constant 0 : i32
    %c0_i32_1 = arith.constant 0 : i32
    return %c0_i32, %c0_i32_0 : i32, i32
  }
}

</mosaic_0001>

<llo_original>
// kernel: myrnn2_sequence.1
$region0: #{myrnn2_sequence.1}
  #allocation0 [shape = 'u32[]', space=smem, size = 0x4, offset = 0x4, fixed_abs, tag = 'smem constant byte address 0x4 - core index']
  #allocation1 [shape = 'u32[144,128]{1,0:T(1,128)}', space=vmem, size = 0x12000, scoped, tag = 'internal scratch']
  #allocation2 [shape = 'f32[2,32]{1,0:T(2,128)}', space=vmem, size = 0x400, scoped, tag = 'scratch operand']
  %s0 = inlined_call_operand.hbm [shape: f32[1,2,32], index: 0, kind: input, shape index: {}]
  %s1 = inlined_call_operand.hbm [shape: f32[2,32], index: 1, kind: input, shape index: {}]
  %s2 = inlined_call_operand.hbm [shape: f32[32,64], index: 2, kind: input, shape index: {}]
  %s3 = inlined_call_operand.vmem [shape: f32[1,64], index: 3, kind: input, shape index: {}]
  %s4 = inlined_call_operand.hbm [shape: f32[1,2,32], index: 4, kind: output, shape index: {0}]
  %s5 = inlined_call_operand.hbm [shape: f32[2,32], index: 5, kind: output, shape index: {1}]
  %6 = xla_tuple %s4, %s5
  %s7 = sld [smem:[#allocation0]]
  $region54: #{myrnn2_sequence.1} parent=0
    _
  %s9 = ssub.s32 1, %s7
  %s10 = scalar_select 0, %s9, %s7
  $region1: #{myrnn2_sequence.1} parent=0
    #allocation3 [shape = 'u8[1024]{0}', space=vmem, size = 0x400, scoped, tag = 'input window, operand 0, single buffered']
    #allocation4 [shape = 's32[1]{0}', space=sflag, size = 0x4, scoped, tag = 'scoped memory for myrnn2_sequence.1']
    #allocation5 [shape = 's32[1]{0}', space=sflag, size = 0x4, scoped, tag = 'scoped memory for myrnn2_sequence.1']
    #allocation6 [shape = 'u8[1024]{0}', space=vmem, size = 0x400, scoped, tag = 'input window, operand 1, single buffered']
    #allocation7 [shape = 's32[1]{0}', space=sflag, size = 0x4, scoped, tag = 'scoped memory for myrnn2_sequence.1']
    #allocation8 [shape = 'u8[16384]{0}', space=vmem, size = 0x4000, scoped, tag = 'input window, operand 2, single buffered']
    #allocation9 [shape = 'u8[1024]{0}', space=vmem, size = 0x400, scoped, tag = 'output window, operand 0, single buffered']
    #allocation10 [shape = 'u8[1024]{0}', space=vmem, size = 0x400, scoped, tag = 'output window, operand 1, single buffered']
    #allocation11 [shape = 's32[1]{0}', space=sflag, size = 0x4, scoped, tag = 'scoped memory for myrnn2_sequence.1']
    %11 = vsyncpa [#allocation4], 0
    %12 = vsyncpa [#allocation7], 0
    %13 = vsyncpa [#allocation5], 0
    %14 = vsyncpa [#allocation11], 0
    // Predicated region
    $region2: #{myrnn2_sequence.1} parent=1 // pred_check
      _
    $region3: #{myrnn2_sequence.1} parent=1 // pred_check_branch
      %16 = sbr.rel (0) target = $region5
    $region4: #{myrnn2_sequence.1} parent=1 // pred_region
      %s18 = ssub.s32 32, 32
      %19 = vsyncadd [#allocation4], %s18
      %s21 = sshll.u32 [#allocation3], 4
      %s22 = int_to_ptr.vmem [resolvable:$true] %s21
      %24 = dma.hbm_to_vmem [thread:$0]  %s0, 32, %s22, [#allocation4]
    $region5: #{myrnn2_sequence.1} parent=1 // pred_fallthru
      _
    // Predicated region
    $region6: #{myrnn2_sequence.1} parent=1 // pred_check
      _
    $region7: #{myrnn2_sequence.1} parent=1 // pred_check_branch
      %26 = sbr.rel (0) target = $region9
    $region8: #{myrnn2_sequence.1} parent=1 // pred_region
      %s28 = ssub.s32 32, 32
      %29 = vsyncadd [#allocation7], %s28
      %s31 = sshll.u32 [#allocation6], 4
      %s32 = int_to_ptr.vmem [resolvable:$true] %s31
      %34 = dma.hbm_to_vmem [thread:$0]  %s1, 32, %s32, [#allocation7]
    $region9: #{myrnn2_sequence.1} parent=1 // pred_fallthru
      _
    // Predicated region
    $region10: #{myrnn2_sequence.1} parent=1 // pred_check
      _
    $region11: #{myrnn2_sequence.1} parent=1 // pred_check_branch
      %36 = sbr.rel (0) target = $region13
    $region12: #{myrnn2_sequence.1} parent=1 // pred_region
      %s38 = ssub.s32 512, 512
      %39 = vsyncadd [#allocation7], %s38
      %s40 = sshll.u32 [#allocation8], 4
      %s41 = int_to_ptr.vmem [resolvable:$true] %s40
      %46 = dma.hbm_to_vmem [thread:$0]  %s2, 512, %s41, [#allocation7], 128, 128, 8
    $region13: #{myrnn2_sequence.1} parent=1 // pred_fallthru
      _
    // Predicated region
    $region14: #{myrnn2_sequence.1} parent=1 // pred_check
      _
    $region15: #{myrnn2_sequence.1} parent=1 // pred_check_branch
      %48 = sbr.rel (0) target = $region17
    $region16: #{myrnn2_sequence.1} parent=1 // pred_region
      _
    $region17: #{myrnn2_sequence.1} parent=1 // pred_fallthru
      _
    // Predicated region
    $region18: #{myrnn2_sequence.1} parent=1 // pred_check
      _
    $region19: #{myrnn2_sequence.1} parent=1 // pred_check_branch
      %50 = sbr.rel (0) target = $region21
    $region20: #{myrnn2_sequence.1} parent=1 // pred_region
      %51 = dma.done [#allocation4], 32
    $region21: #{myrnn2_sequence.1} parent=1 // pred_fallthru
      _
    // Predicated region
    $region22: #{myrnn2_sequence.1} parent=1 // pred_check
      _
    $region23: #{myrnn2_sequence.1} parent=1 // pred_check_branch
      %53 = sbr.rel (0) target = $region25
    $region24: #{myrnn2_sequence.1} parent=1 // pred_region
      %54 = dma.done [#allocation7], 32
    $region25: #{myrnn2_sequence.1} parent=1 // pred_fallthru
      _
    // Predicated region
    $region26: #{myrnn2_sequence.1} parent=1 // pred_check
      _
    $region27: #{myrnn2_sequence.1} parent=1 // pred_check_branch
      %56 = sbr.rel (0) target = $region29
    $region28: #{myrnn2_sequence.1} parent=1 // pred_region
      %57 = dma.done [#allocation7], 512
    $region29: #{myrnn2_sequence.1} parent=1 // pred_fallthru
      _
    %p58 = scmp.eq.s32.totalorder 0, 0
    // Predicated region
    $region30: #{myrnn2_sequence.1} parent=1 // pred_check
      %p59 = pneg %p58
    $region31: #{myrnn2_sequence.1} parent=1 // pred_check_branch
      %61 = sbr.rel (%p59) target = $region33
    $region32: #{myrnn2_sequence.1} parent=1 // pred_region
      %v62 = vld [vmem:[#allocation6] sm:$0x3]
      %vm63 = vcmask 254976
      %64 = vst.msk [vmem:[#allocation2] sm:$0x3] %vm63, %v62
    $region33: #{myrnn2_sequence.1} parent=1 // pred_fallthru
      _
    %v65 = vld [vmem:[#allocation3] sm:$0x3]
    %v66 = vld [vmem:[#allocation2] sm:$0x3]
    %v67 = vmul.f32 %v65, %v66
    %v68 = vld [vmem:[#allocation8] sm:$0xff]
    %v69 = vld [vmem:[#allocation8 + $0x8] sm:$0xff]
    %v70 = vld [vmem:[#allocation8 + $0x10] sm:$0xff]
    %v71 = vld [vmem:[#allocation8 + $0x18] sm:$0xff]
    %v72 = vld [vmem:[%s3] sm:$0x1]
    %v74 = vlaneseq
    %v75 = vshrl.u32 %v74, 7
    %v76 = vsub.s32 0, %v75
    %v77 = vrot.slane %v72, %v76
    %vm79 = vcmask 261120
    %v81 = vsel %vm79, %v67, 0
    %83 = vmatprep.subr.mxu0 0.0
    %84 = vmatpush1.msra.mxu0 0.0
    %85 = vmatprep.subr.mxu0 0.0
    %86 = vmatpush1.msra.mxu0 0.0
    %87 = vmatprep.subr.mxu0 0.0
    %88 = vmatpush1.msra.mxu0 0.0
    %89 = vmatprep.subr.mxu0 0.0
    %90 = vmatpush1.msra.mxu0 0.0
    %91 = vmatprep.subr.mxu0 0.0
    %92 = vmatpush1.msra.mxu0 0.0
    %93 = vmatprep.subr.mxu0 0.0
    %94 = vmatpush1.msra.mxu0 0.0
    %95 = vmatprep.subr.mxu0 0.0
    %96 = vmatpush1.msra.mxu0 0.0
    %97 = vmatprep.subr.mxu0 0.0
    %98 = vmatpush1.msra.mxu0 0.0
    %99 = vmatprep.subr.mxu0 0.0
    %100 = vmatpush1.msra.mxu0 0.0
    %101 = vmatprep.subr.mxu0 0.0
    %102 = vmatpush1.msra.mxu0 0.0
    %103 = vmatprep.subr.mxu0 0.0
    %104 = vmatpush1.msra.mxu0 0.0
    %105 = vmatprep.subr.mxu0 0.0
    %106 = vmatpush1.msra.mxu0 0.0
    %107 = vmatprep.subr.mxu0 0.0
    %108 = vmatpush1.msra.mxu0 %v71
    %109 = vmatprep.subr.mxu0 0.0
    %110 = vmatpush1.msra.mxu0 %v70
    %111 = vmatprep.subr.mxu0 0.0
    %112 = vmatpush1.msra.mxu0 %v69
    %113 = vmatprep.subr.mxu0 0.0
    %114 = vmatpush1.msra.mxu0 %v68
    %115 = vmatprep.subr.mxu0 0.0
    %116 = vmatpush2.msra.mxu0 0.0
    %117 = vmatprep.subr.mxu0 0.0
    %118 = vmatpush2.msra.mxu0 0.0
    %119 = vmatprep.subr.mxu0 0.0
    %120 = vmatpush2.msra.mxu0 0.0
    %121 = vmatprep.subr.mxu0 0.0
    %122 = vmatpush2.msra.mxu0 0.0
    %123 = vmatprep.subr.mxu0 0.0
    %124 = vmatpush2.msra.mxu0 0.0
    %125 = vmatprep.subr.mxu0 0.0
    %126 = vmatpush2.msra.mxu0 0.0
    %127 = vmatprep.subr.mxu0 0.0
    %128 = vmatpush2.msra.mxu0 0.0
    %129 = vmatprep.subr.mxu0 0.0
    %130 = vmatpush2.msra.mxu0 0.0
    %131 = vmatprep.subr.mxu0 0.0
    %132 = vmatpush2.msra.mxu0 0.0
    %133 = vmatprep.subr.mxu0 0.0
    %134 = vmatpush2.msra.mxu0 0.0
    %135 = vmatprep.subr.mxu0 0.0
    %136 = vmatpush2.msra.mxu0 0.0
    %137 = vmatprep.subr.mxu0 0.0
    %138 = vmatpush2.msra.mxu0 0.0
    %139 = vmatprep.subr.mxu0 0.0
    %140 = vmatpush2.msra.mxu0 0.0
    %141 = vmatprep.subr.mxu0 0.0
    %142 = vmatpush2.msra.mxu0 0.0
    %143 = vmatprep.subr.mxu0 0.0
    %144 = vmatpush2.msra.mxu0 0.0
    %145 = vmatprep.subr.mxu0 0.0
    %146 = vmatpush2.msra.mxu0 0.0
    %147 = vmatprep.mubr.f32.mxu0 0.0
    %148 = vmatmul.mubr.f32.gmra.mxu0 %v81
    %v149 = vpop.f32.mrf.mxu0
    %v150 = vadd.f32 %v77, %v149
    %v151 = vpop.f32.mrf.mxu0
    %152 = vdwg.mxu0
    %v153 = vmul.f32 %v150, 0.01
    %v154 = vmax.f32 %v150, %v153
    %v155 = vxor.u32 %v150, 2147483648
    %v156 = vmul.f32 %v155, 1.442695
    %v157 = vpow.pop %v156
    %v158 = vadd.f32 %v157, 1.0
    %v159 = vrcp.pop %v158
    %v160 = vmul.f32 1.0, %v159
    %vm161 = vcmask 254976
    %162 = vst.msk [vmem:[#allocation9] sm:$0x3] %vm161, %v154
    %164 = vrot.lane.b32.xlu0 %v160, 96
    %v165 = vpop.permute.xlu0 %164
    %167 = vst.msk [vmem:[#allocation2] sm:$0x3] %vm161, %v165
    // Predicated region
    $region34: #{myrnn2_sequence.1} parent=1 // pred_check
      %p168 = pneg %p58
    $region35: #{myrnn2_sequence.1} parent=1 // pred_check_branch
      %170 = sbr.rel (%p168) target = $region37
    $region36: #{myrnn2_sequence.1} parent=1 // pred_region
      %171 = vst.msk [vmem:[#allocation10] sm:$0x3] %vm161, %v165
    $region37: #{myrnn2_sequence.1} parent=1 // pred_fallthru
      _
    // Predicated region
    $region38: #{myrnn2_sequence.1} parent=1 // pred_check
      _
    $region39: #{myrnn2_sequence.1} parent=1 // pred_check_branch
      %173 = sbr.rel (0) target = $region41
    $region40: #{myrnn2_sequence.1} parent=1 // pred_region
      %s175 = ssub.s32 32, 32
      %176 = vsyncadd [#allocation5], %s175
      %s178 = sshll.u32 [#allocation9], 4
      %s179 = int_to_ptr.vmem [resolvable:$true] %s178
      %181 = dma.vmem_to_hbm [thread:$0]  %s179, 32, %s4, [#allocation5]
    $region41: #{myrnn2_sequence.1} parent=1 // pred_fallthru
      _
    // Predicated region
    $region42: #{myrnn2_sequence.1} parent=1 // pred_check
      _
    $region43: #{myrnn2_sequence.1} parent=1 // pred_check_branch
      %183 = sbr.rel (0) target = $region45
    $region44: #{myrnn2_sequence.1} parent=1 // pred_region
      %s185 = ssub.s32 32, 32
      %186 = vsyncadd [#allocation11], %s185
      %s188 = sshll.u32 [#allocation10], 4
      %s189 = int_to_ptr.vmem [resolvable:$true] %s188
      %191 = dma.vmem_to_hbm [thread:$0]  %s189, 32, %s5, [#allocation11]
    $region45: #{myrnn2_sequence.1} parent=1 // pred_fallthru
      _
    // Predicated region
    $region46: #{myrnn2_sequence.1} parent=1 // pred_check
      _
    $region47: #{myrnn2_sequence.1} parent=1 // pred_check_branch
      %193 = sbr.rel (0) target = $region49
    $region48: #{myrnn2_sequence.1} parent=1 // pred_region
      %194 = dma.done [#allocation5], 32
    $region49: #{myrnn2_sequence.1} parent=1 // pred_fallthru
      _
    // Predicated region
    $region50: #{myrnn2_sequence.1} parent=1 // pred_check
      _
    $region51: #{myrnn2_sequence.1} parent=1 // pred_check_branch
      %196 = sbr.rel (0) target = $region53
    $region52: #{myrnn2_sequence.1} parent=1 // pred_region
      %197 = dma.done [#allocation11], 32
    $region53: #{myrnn2_sequence.1} parent=1 // pred_fallthru
      _
    %198 = vsyncpa [#allocation4], 1
    %199 = vsyncpa [#allocation7], 1
    %200 = vsyncpa [#allocation5], 1
    %201 = vsyncpa [#allocation11], 1

</llo_original>
